<compile_context>
chip_gen: v7x
topology: tpu7x:2x2x1
jax: 0.10.0
libtpu: 0.0.40
codegen_flags: <defaults>
</compile_context>

<pallas_src>
import jax
import jax.numpy as jnp
from jax.experimental import pallas as pl
from jax.experimental.pallas import tpu as pltpu

INPUT_DIM = 256
PARAM_DIM = 8
MARKET_DIM = 4
H1 = PARAM_DIM * 4            # 32
H2 = PARAM_DIM * 2            # 16
N_HEAD = 1 + 1 + MARKET_DIM   # 6 fused head columns
OUT_PAD = 8                   # padded fused-head width
LN_EPS = 1e-5                 # torch.nn.LayerNorm default
MAX_TB = 2048                 # default batch-tile cap (sweepable)


def _softplus(z):
    # matches torch.nn.functional.softplus(beta=1, threshold=20)
    return jnp.where(z > 20.0, z, jnp.log1p(jnp.exp(jnp.minimum(z, 20.0))))


def _round_up(n, m):
    return ((n + m - 1) // m) * m


# --------------------------------------------------------------------------
# Kernel
# --------------------------------------------------------------------------
def meta_controller_kernel(x_ref, w1_ref, b1_ref, g_ref, beta_ref,
                           wf_ref, bf_ref, out_ref):
    # In-kernel cast of x to the MXU dtype (VPU cast, hidden under the x DMA).
    x = x_ref[...].astype(w1_ref.dtype)

    # --- Linear(256, 32): bf16 operands on the MXU, f32 accumulation ---
    h = jnp.dot(x, w1_ref[...], preferred_element_type=jnp.float32)
    h = h + b1_ref[...]

    # --- LayerNorm(32), f32 (biased variance, eps matches torch) ---
    mu = jnp.mean(h, axis=-1, keepdims=True)
    var = jnp.mean((h - mu) * (h - mu), axis=-1, keepdims=True)
    h = (h - mu) * jax.lax.rsqrt(var + LN_EPS)
    h = h * g_ref[...] + beta_ref[...]

    # --- ReLU ---
    h = jnp.maximum(h, 0.0)

    # --- fused Linear: W2 + all three heads folded into one (32, 8) dot.
    #     Single bf16 MXU push (K=32, N=8 is pure epilogue latency otherwise).
    logits = jnp.dot(h.astype(wf_ref.dtype), wf_ref[...],
                     preferred_element_type=jnp.float32) + bf_ref[...]

    # --- per-column nonlinearities (EUP), single 8-lane store ---
    sp = _softplus(logits)
    col = jax.lax.broadcasted_iota(jnp.int32, logits.shape, 1)
    out_ref[...] = jnp.where(
        col == 0, jax.nn.sigmoid(logits),          # memory_retention
        jnp.where(col == 1, sp + 1.0, sp))         # attn_temp / market_importance


# --------------------------------------------------------------------------
# One-time parameter preparation (hoisted out of the per-call wrapper)
# --------------------------------------------------------------------------
def fold_params(params, *, use_bf16=True):
    """Fold W2 into the three heads (exact algebra) and pre-cast W1/W_fused."""
    mxu_dtype = jnp.bfloat16 if use_bf16 else jnp.float32
    w_heads = jnp.concatenate([params["wm"], params["wa"], params["wi"]], axis=1)  # (16, 6)
    b_heads = jnp.concatenate([params["bm"], params["ba"], params["bi"]], axis=1)  # (1, 6)
    w_fused = params["w2"] @ w_heads                                               # (32, 6)
    b_fused = params["b2"] @ w_heads + b_heads                                     # (1, 6)
    w_fused = jnp.pad(w_fused, ((0, 0), (0, OUT_PAD - N_HEAD))).astype(mxu_dtype)
    b_fused = jnp.pad(b_fused, ((0, 0), (0, OUT_PAD - N_HEAD))).astype(jnp.float32)
    return {
        "w1": params["w1"].astype(mxu_dtype),
        "b1": params["b1"].astype(jnp.float32),
        "ln_g": params["ln_g"].astype(jnp.float32),
        "ln_b": params["ln_b"].astype(jnp.float32),
        "w_fused": w_fused,
        "b_fused": b_fused,
    }


def _batch_dim_semantics(grid):
    """CORE_PARALLEL shards the batch grid axis across both TensorCores on
    v7x (each TC has its own HBM path -> ~2x on this DMA-bound kernel).
    Plain "parallel" elsewhere (v5e/v6e have a single TC)."""
    if grid < 2:
        return ("arbitrary",)
    try:
        kind = jax.devices()[0].device_kind.lower()
        if "7" in kind and hasattr(pltpu, "CORE_PARALLEL"):
            return (pltpu.CORE_PARALLEL,)
    except Exception:
        pass
    return ("parallel",)


def _x_block_spec(tb, grid, buffers):
    idx_map = lambda i: (i, 0)
    if buffers > 2 and grid >= buffers:
        try:
            # Deeper pipelining of the dominant (x) input stream.
            return pl.BlockSpec((tb, INPUT_DIM), idx_map,
                                pipeline_mode=pl.Buffered(buffers))
        except TypeError:
            pass  # BlockSpec without pipeline_mode support -> default 2 buffers
    return pl.BlockSpec((tb, INPUT_DIM), idx_map)


# --------------------------------------------------------------------------
# Forward wrapper
# --------------------------------------------------------------------------
def meta_controller_forward(x, folded, *, tb=None, buffers=3):
    """x: (B, 256) array (any float dtype; cast to bf16 inside the kernel).
    folded: output of fold_params()."""
    B = x.shape[0]
    if B == 0:
        z = jnp.zeros((0, 1), jnp.float32)
        return {"memory_retention": z,
                "attention_temperature": z,
                "market_importance": jnp.zeros((0, MARKET_DIM), jnp.float32)}

    # Pad batch only up to a multiple of 8 (sublane granularity), never to TB.
    B8 = _round_up(B, 8)
    if tb is None:
        tb = min(MAX_TB, B8)          # sweepable; 2048x256 f32 tile = 2 MiB
    tb = max(8, min(_round_up(tb, 8), 8192))
    if B8 != B:
        x = jnp.pad(x, ((0, B8 - B), (0, 0)))
    grid = pl.cdiv(B8, tb)            # partial last tile is masked by Pallas

    def resident(shape):
        # constant index_map -> block stays VMEM-resident across grid steps
        return pl.BlockSpec(shape, lambda i: (0, 0))

    grid_spec = pltpu.PrefetchScalarGridSpec(
        num_scalar_prefetch=0,
        grid=(grid,),
        in_specs=[
            _x_block_spec(tb, grid, buffers),          # x tiles (pipelined)
            resident((INPUT_DIM, H1)),                 # W1 (bf16)
            resident((1, H1)),                         # b1
            resident((1, H1)),                         # LN gamma
            resident((1, H1)),                         # LN beta
            resident((H1, OUT_PAD)),                   # fused head weight (bf16)
            resident((1, OUT_PAD)),                    # fused head bias
        ],
        out_specs=pl.BlockSpec((tb, OUT_PAD), lambda i: (i, 0)),
    )

    x_bytes = B8 * INPUT_DIM * x.dtype.itemsize
    w_bytes = (INPUT_DIM * H1 + H1 * OUT_PAD) * folded["w1"].dtype.itemsize \
        + (3 * H1 + OUT_PAD) * 4
    cost = pl.CostEstimate(
        flops=2 * B8 * INPUT_DIM * H1 + 2 * B8 * H1 * OUT_PAD,
        transcendentals=2 * B8 * OUT_PAD,
        bytes_accessed=x_bytes + B8 * OUT_PAD * 4 + w_bytes,
    )

    slab = pl.pallas_call(
        meta_controller_kernel,
        out_shape=jax.ShapeDtypeStruct((B8, OUT_PAD), jnp.float32),
        grid_spec=grid_spec,
        compiler_params=pltpu.CompilerParams(
            dimension_semantics=_batch_dim_semantics(grid),
            vmem_limit_bytes=32 * 1024 * 1024,   # plenty (tb<=8192, <=3 bufs), v7x-safe
        ),
        cost_estimate=cost,
    )(x, folded["w1"], folded["b1"], folded["ln_g"], folded["ln_b"],
      folded["w_fused"], folded["b_fused"])

    return {
        "memory_retention": slab[:B, 0:1],
        "attention_temperature": slab[:B, 1:2],
        "market_importance": slab[:B, 2:2 + MARKET_DIM],
    }


# --------------------------------------------------------------------------
# Parameter init + pure-JAX reference (for verification)
# --------------------------------------------------------------------------
def init_params(key):
    ks = jax.random.split(key, 10)

    def linear(kw, kb, fan_in, fan_out):
        bound = 1.0 / jnp.sqrt(fan_in)
        w = jax.random.uniform(kw, (fan_in, fan_out), jnp.float32, -bound, bound)
        b = jax.random.uniform(kb, (1, fan_out), jnp.float32, -bound, bound)
        return w, b

    w1, b1 = linear(ks[0], ks[1], INPUT_DIM, H1)
    w2, b2 = linear(ks[2], ks[3], H1, H2)
    wm, bm = linear(ks[4], ks[5], H2, 1)
    wa, ba = linear(ks[6], ks[7], H2, 1)
    wi, bi = linear(ks[8], ks[9], H2, MARKET_DIM)
    return {
        "w1": w1, "b1": b1,
        "ln_g": jnp.ones((1, H1), jnp.float32),
        "ln_b": jnp.zeros((1, H1), jnp.float32),
        "w2": w2, "b2": b2,
        "wm": wm, "bm": bm,
        "wa": wa, "ba": ba,
        "wi": wi, "bi": bi,
    }


def reference_forward(x, p):
    h = x @ p["w1"] + p["b1"]
    mu = jnp.mean(h, axis=-1, keepdims=True)
    var = jnp.mean((h - mu) ** 2, axis=-1, keepdims=True)
    h = (h - mu) / jnp.sqrt(var + LN_EPS) * p["ln_g"] + p["ln_b"]
    h = jnp.maximum(h, 0.0)
    f = h @ p["w2"] + p["b2"]
    return {
        "memory_retention": jax.nn.sigmoid(f @ p["wm"] + p["bm"]),
        "attention_temperature": jax.nn.softplus(f @ p["wa"] + p["ba"]) + 1.0,
        "market_importance": jax.nn.softplus(f @ p["wi"] + p["bi"]),
    }


if __name__ == "__main__":
    key = jax.random.PRNGKey(0)
    kx, kp = jax.random.split(key)
    params = init_params(kp)
    folded = fold_params(params)          # one-time fold (not per call)

    # --- small single-tile case -------------------------------------------
    B = 8
    x = jax.random.normal(kx, (B, INPUT_DIM), jnp.float32)
    out = meta_controller_forward(x, folded)
    jax.block_until_ready(out)
    ref = reference_forward(x, params)
    for k in out:
        assert out[k].shape == ref[k].shape, k
        # tolerance accounts for bf16 MXU inputs (f32 accumulation + f32 epilogue)
        assert jnp.allclose(out[k], ref[k], atol=1e-2, rtol=1e-2), (
            k, float(jnp.max(jnp.abs(out[k] - ref[k]))))

    # --- multi-step grid + padded / partial (OOB-masked) last tile ---------
    B2 = 20                                # padded to 24; tb=16 -> 2 grid steps,
    x2 = jax.random.normal(jax.random.PRNGKey(1), (B2, INPUT_DIM), jnp.float32)
    out2 = meta_controller_forward(x2, folded, tb=16)  # last tile partially OOB
    jax.block_until_ready(out2)
    ref2 = reference_forward(x2, params)
    for k in out2:
        assert out2[k].shape == ref2[k].shape, k
        assert jnp.allclose(out2[k], ref2[k], atol=1e-2, rtol=1e-2), (
            k, float(jnp.max(jnp.abs(out2[k] - ref2[k]))))

    print("KERNEL_OK")
</pallas_src>

<mosaic_0001>
module attributes {stable_mosaic.version = 11 : i64} {
  func.func @meta_controller_kernel(%arg0: i32, %arg1: memref<8x256xf32, #tpu.memory_space<vmem>>, %arg2: memref<256x32xbf16, #tpu.memory_space<vmem>>, %arg3: memref<1x32xf32, #tpu.memory_space<vmem>>, %arg4: memref<1x32xf32, #tpu.memory_space<vmem>>, %arg5: memref<1x32xf32, #tpu.memory_space<vmem>>, %arg6: memref<32x8xbf16, #tpu.memory_space<vmem>>, %arg7: memref<1x8xf32, #tpu.memory_space<vmem>>, %arg8: memref<8x8xf32, #tpu.memory_space<vmem>>) attributes {dimension_semantics = [#tpu.dimension_semantics<arbitrary>], iteration_bounds = array<i64: 1>, scalar_prefetch = 0 : i64, scratch_operands = 0 : i64, tpu.core_type = #tpu.core_type<tc>, window_params = [{transform_indices = @transform_0, window_bounds = array<i64: 8, 256>}, {pipeline_mode = #tpu.pipeline_mode<synchronous>, transform_indices = @transform_1, window_bounds = array<i64: 256, 32>}, {pipeline_mode = #tpu.pipeline_mode<synchronous>, transform_indices = @transform_2, window_bounds = array<i64: 1, 32>}, {pipeline_mode = #tpu.pipeline_mode<synchronous>, transform_indices = @transform_3, window_bounds = array<i64: 1, 32>}, {pipeline_mode = #tpu.pipeline_mode<synchronous>, transform_indices = @transform_4, window_bounds = array<i64: 1, 32>}, {pipeline_mode = #tpu.pipeline_mode<synchronous>, transform_indices = @transform_5, window_bounds = array<i64: 32, 8>}, {pipeline_mode = #tpu.pipeline_mode<synchronous>, transform_indices = @transform_6, window_bounds = array<i64: 1, 8>}, {transform_indices = @transform_7, window_bounds = array<i64: 8, 8>}]} {
    %c0 = arith.constant 0 : index
    %c0_0 = arith.constant 0 : index
    %0 = vector.load %arg1[%c0, %c0_0] : memref<8x256xf32, #tpu.memory_space<vmem>>, vector<8x256xf32>
    %1 = arith.truncf %0 : vector<8x256xf32> to vector<8x256xbf16>
    %c0_1 = arith.constant 0 : index
    %c0_2 = arith.constant 0 : index
    %2 = vector.load %arg2[%c0_1, %c0_2] : memref<256x32xbf16, #tpu.memory_space<vmem>>, vector<256x32xbf16>
    %cst = arith.constant dense<0.000000e+00> : vector<8x32xf32>
    %3 = tpu.matmul %1, %2, %cst {dimension_numbers = #tpu.dot_dimension_numbers<[1], [0], [0], [1], [0, 0, 1, 1], [], []>} : vector<8x256xbf16>, vector<256x32xbf16>, vector<8x32xf32> -> vector<8x32xf32>
    %c0_3 = arith.constant 0 : index
    %c0_4 = arith.constant 0 : index
    %4 = vector.load %arg3[%c0_3, %c0_4] : memref<1x32xf32, #tpu.memory_space<vmem>>, vector<1x32xf32>
    %5 = vector.broadcast %4 : vector<1x32xf32> to vector<8x32xf32>
    %6 = arith.addf %3, %5 : vector<8x32xf32>
    %cst_5 = arith.constant dense<0.000000e+00> : vector<8xf32>
    %7 = vector.multi_reduction <add>, %6, %cst_5 [1] : vector<8x32xf32> to vector<8xf32>
    %8 = vector.shape_cast %7 : vector<8xf32> to vector<8x1xf32>
    %cst_6 = arith.constant 3.200000e+01 : f32
    %9 = vector.broadcast %cst_6 : f32 to vector<8x1xf32>
    %10 = arith.divf %8, %9 : vector<8x1xf32>
    %11 = vector.broadcast %10 : vector<8x1xf32> to vector<8x32xf32>
    %12 = arith.subf %6, %11 : vector<8x32xf32>
    %13 = vector.broadcast %10 : vector<8x1xf32> to vector<8x32xf32>
    %14 = arith.subf %6, %13 : vector<8x32xf32>
    %15 = arith.mulf %12, %14 : vector<8x32xf32>
    %cst_7 = arith.constant dense<0.000000e+00> : vector<8xf32>
    %16 = vector.multi_reduction <add>, %15, %cst_7 [1] : vector<8x32xf32> to vector<8xf32>
    %17 = vector.shape_cast %16 : vector<8xf32> to vector<8x1xf32>
    %cst_8 = arith.constant 3.200000e+01 : f32
    %18 = vector.broadcast %cst_8 : f32 to vector<8x1xf32>
    %19 = arith.divf %17, %18 : vector<8x1xf32>
    %20 = vector.broadcast %10 : vector<8x1xf32> to vector<8x32xf32>
    %21 = arith.subf %6, %20 : vector<8x32xf32>
    %cst_9 = arith.constant 9.99999974E-6 : f32
    %22 = vector.broadcast %cst_9 : f32 to vector<8x1xf32>
    %23 = arith.addf %19, %22 : vector<8x1xf32>
    %24 = math.rsqrt %23 : vector<8x1xf32>
    %25 = vector.broadcast %24 : vector<8x1xf32> to vector<8x32xf32>
    %26 = arith.mulf %21, %25 : vector<8x32xf32>
    %c0_10 = arith.constant 0 : index
    %c0_11 = arith.constant 0 : index
    %27 = vector.load %arg4[%c0_10, %c0_11] : memref<1x32xf32, #tpu.memory_space<vmem>>, vector<1x32xf32>
    %28 = vector.broadcast %27 : vector<1x32xf32> to vector<8x32xf32>
    %29 = arith.mulf %26, %28 : vector<8x32xf32>
    %c0_12 = arith.constant 0 : index
    %c0_13 = arith.constant 0 : index
    %30 = vector.load %arg5[%c0_12, %c0_13] : memref<1x32xf32, #tpu.memory_space<vmem>>, vector<1x32xf32>
    %31 = vector.broadcast %30 : vector<1x32xf32> to vector<8x32xf32>
    %32 = arith.addf %29, %31 : vector<8x32xf32>
    %cst_14 = arith.constant 0.000000e+00 : f32
    %33 = vector.broadcast %cst_14 : f32 to vector<8x32xf32>
    %34 = arith.maximumf %32, %33 : vector<8x32xf32>
    %35 = arith.truncf %34 : vector<8x32xf32> to vector<8x32xbf16>
    %c0_15 = arith.constant 0 : index
    %c0_16 = arith.constant 0 : index
    %36 = vector.load %arg6[%c0_15, %c0_16] : memref<32x8xbf16, #tpu.memory_space<vmem>>, vector<32x8xbf16>
    %cst_17 = arith.constant dense<0.000000e+00> : vector<8x8xf32>
    %37 = tpu.matmul %35, %36, %cst_17 {dimension_numbers = #tpu.dot_dimension_numbers<[1], [0], [0], [1], [0, 0, 1, 1], [], []>} : vector<8x32xbf16>, vector<32x8xbf16>, vector<8x8xf32> -> vector<8x8xf32>
    %c0_18 = arith.constant 0 : index
    %c0_19 = arith.constant 0 : index
    %38 = vector.load %arg7[%c0_18, %c0_19] : memref<1x8xf32, #tpu.memory_space<vmem>>, vector<1x8xf32>
    %39 = vector.broadcast %38 : vector<1x8xf32> to vector<8x8xf32>
    %40 = arith.addf %37, %39 : vector<8x8xf32>
    %cst_20 = arith.constant 2.000000e+01 : f32
    %41 = vector.broadcast %cst_20 : f32 to vector<8x8xf32>
    %42 = arith.cmpf ogt, %40, %41 : vector<8x8xf32>
    %cst_21 = arith.constant 2.000000e+01 : f32
    %43 = vector.broadcast %cst_21 : f32 to vector<8x8xf32>
    %44 = arith.minimumf %40, %43 : vector<8x8xf32>
    %45 = math.exp %44 : vector<8x8xf32>
    %46 = math.log1p %45 : vector<8x8xf32>
    %47 = arith.select %42, %40, %46 : vector<8x8xi1>, vector<8x8xf32>
    %48 = tpu.iota {dimensions = array<i32: 1>} : vector<8x8xi32>
    %c0_i32 = arith.constant 0 : i32
    %49 = vector.broadcast %c0_i32 : i32 to vector<8x8xi32>
    %50 = arith.cmpi eq, %48, %49 : vector<8x8xi32>
    %51 = arith.negf %40 : vector<8x8xf32>
    %52 = math.exp %51 : vector<8x8xf32>
    %cst_22 = arith.constant 1.000000e+00 : f32
    %53 = vector.broadcast %cst_22 : f32 to vector<8x8xf32>
    %54 = arith.addf %53, %52 : vector<8x8xf32>
    %55 = arith.divf %53, %54 : vector<8x8xf32>
    %c1_i32 = arith.constant 1 : i32
    %56 = vector.broadcast %c1_i32 : i32 to vector<8x8xi32>
    %57 = arith.cmpi eq, %48, %56 : vector<8x8xi32>
    %cst_23 = arith.constant 1.000000e+00 : f32
    %58 = vector.broadcast %cst_23 : f32 to vector<8x8xf32>
    %59 = arith.addf %47, %58 : vector<8x8xf32>
    %60 = arith.select %57, %59, %47 : vector<8x8xi1>, vector<8x8xf32>
    %61 = arith.select %50, %55, %60 : vector<8x8xi1>, vector<8x8xf32>
    %c0_24 = arith.constant 0 : index
    %c0_25 = arith.constant 0 : index
    %62 = vector.load %arg8[%c0_24, %c0_25] : memref<8x8xf32, #tpu.memory_space<vmem>>, vector<8x8xf32>
    tpu.vector_store %arg8[%c0_24, %c0_25], %61 {strides = array<i32>} : memref<8x8xf32, #tpu.memory_space<vmem>>, vector<8x8xf32>,
    return
  }
  func.func @transform_0(%arg0: i32) -> (i32, i32) {
    %c0_i32 = arith.constant 0 : i32
    %c0_i32_0 = arith.constant 0 : i32
    return %arg0, %c0_i32 : i32, i32
  }
  func.func @transform_1(%arg0: i32) -> (i32, i32) {
    %c0_i32 = arith.constant 0 : i32
    %c0_i32_0 = arith.constant 0 : i32
    %c0_i32_1 = arith.constant 0 : i32
    return %c0_i32, %c0_i32_0 : i32, i32
  }
  func.func @transform_2(%arg0: i32) -> (i32, i32) {
    %c0_i32 = arith.constant 0 : i32
    %c0_i32_0 = arith.constant 0 : i32
    %c0_i32_1 = arith.constant 0 : i32
    return %c0_i32, %c0_i32_0 : i32, i32
  }
  func.func @transform_3(%arg0: i32) -> (i32, i32) {
    %c0_i32 = arith.constant 0 : i32
    %c0_i32_0 = arith.constant 0 : i32
    %c0_i32_1 = arith.constant 0 : i32
    return %c0_i32, %c0_i32_0 : i32, i32
  }
  func.func @transform_4(%arg0: i32) -> (i32, i32) {
    %c0_i32 = arith.constant 0 : i32
    %c0_i32_0 = arith.constant 0 : i32
    %c0_i32_1 = arith.constant 0 : i32
    return %c0_i32, %c0_i32_0 : i32, i32
  }
  func.func @transform_5(%arg0: i32) -> (i32, i32) {
    %c0_i32 = arith.constant 0 : i32
    %c0_i32_0 = arith.constant 0 : i32
    %c0_i32_1 = arith.constant 0 : i32
    return %c0_i32, %c0_i32_0 : i32, i32
  }
  func.func @transform_6(%arg0: i32) -> (i32, i32) {
    %c0_i32 = arith.constant 0 : i32
    %c0_i32_0 = arith.constant 0 : i32
    %c0_i32_1 = arith.constant 0 : i32
    return %c0_i32, %c0_i32_0 : i32, i32
  }
  func.func @transform_7(%arg0: i32) -> (i32, i32) {
    %c0_i32 = arith.constant 0 : i32
    %c0_i32_0 = arith.constant 0 : i32
    return %arg0, %c0_i32 : i32, i32
  }
}

</mosaic_0001>

<llo_original>
// kernel: tpu_custom_call.1
$region0: #{tpu_custom_call.1}
  #allocation0 [shape = 'u32[]', space=smem, size = 0x4, offset = 0x4, fixed_abs, tag = 'smem constant byte address 0x4 - core index']
  #allocation1 [shape = 'u32[144,128]{1,0:T(1,128)}', space=vmem, size = 0x12000, scoped, tag = 'internal scratch']
  %s0 = inlined_call_operand.vmem [shape: f32[8,256], index: 0, kind: input, shape index: {}]
  %s1 = inlined_call_operand.vmem [shape: bf16[256,32], index: 1, kind: input, shape index: {}]
  %s2 = inlined_call_operand.vmem [shape: f32[1,32], index: 2, kind: input, shape index: {}]
  %s3 = inlined_call_operand.vmem [shape: f32[1,32], index: 3, kind: input, shape index: {}]
  %s4 = inlined_call_operand.vmem [shape: f32[1,32], index: 4, kind: input, shape index: {}]
  %s5 = inlined_call_operand.vmem [shape: bf16[32,8], index: 5, kind: input, shape index: {}]
  %s6 = inlined_call_operand.vmem [shape: f32[1,8], index: 6, kind: input, shape index: {}]
  %s7 = inlined_call_operand.hbm [shape: f32[8,8], index: 7, kind: output, shape index: {}]
  %s8 = sld [smem:[#allocation0]]
  $region38: #{tpu_custom_call.1} parent=0
    _
  %s10 = ssub.s32 1, %s8
  %s11 = scalar_select 0, %s10, %s8
  $region1: #{tpu_custom_call.1} parent=0
    #allocation2 [shape = 'u8[4096]{0}', space=vmem, size = 0x1000, scoped, tag = 'output window, operand 0, single buffered']
    #allocation3 [shape = 's32[1]{0}', space=sflag, size = 0x4, scoped, tag = 'scoped memory for tpu_custom_call.1']
    %12 = vsyncpa [#allocation3], 0
    // Predicated region
    $region2: #{tpu_custom_call.1} parent=1 // pred_check
      _
    $region3: #{tpu_custom_call.1} parent=1 // pred_check_branch
      %14 = sbr.rel (0) target = $region5
    $region4: #{tpu_custom_call.1} parent=1 // pred_region
      _
    $region5: #{tpu_custom_call.1} parent=1 // pred_fallthru
      _
    // Predicated region
    $region6: #{tpu_custom_call.1} parent=1 // pred_check
      _
    $region7: #{tpu_custom_call.1} parent=1 // pred_check_branch
      %16 = sbr.rel (0) target = $region9
    $region8: #{tpu_custom_call.1} parent=1 // pred_region
      _
    $region9: #{tpu_custom_call.1} parent=1 // pred_fallthru
      _
    // Predicated region
    $region10: #{tpu_custom_call.1} parent=1 // pred_check
      _
    $region11: #{tpu_custom_call.1} parent=1 // pred_check_branch
      %18 = sbr.rel (0) target = $region13
    $region12: #{tpu_custom_call.1} parent=1 // pred_region
      _
    $region13: #{tpu_custom_call.1} parent=1 // pred_fallthru
      _
    // Predicated region
    $region14: #{tpu_custom_call.1} parent=1 // pred_check
      _
    $region15: #{tpu_custom_call.1} parent=1 // pred_check_branch
      %20 = sbr.rel (0) target = $region17
    $region16: #{tpu_custom_call.1} parent=1 // pred_region
      _
    $region17: #{tpu_custom_call.1} parent=1 // pred_fallthru
      _
    // Predicated region
    $region18: #{tpu_custom_call.1} parent=1 // pred_check
      _
    $region19: #{tpu_custom_call.1} parent=1 // pred_check_branch
      %22 = sbr.rel (0) target = $region21
    $region20: #{tpu_custom_call.1} parent=1 // pred_region
      _
    $region21: #{tpu_custom_call.1} parent=1 // pred_fallthru
      _
    // Predicated region
    $region22: #{tpu_custom_call.1} parent=1 // pred_check
      _
    $region23: #{tpu_custom_call.1} parent=1 // pred_check_branch
      %24 = sbr.rel (0) target = $region25
    $region24: #{tpu_custom_call.1} parent=1 // pred_region
      _
    $region25: #{tpu_custom_call.1} parent=1 // pred_fallthru
      _
    // Predicated region
    $region26: #{tpu_custom_call.1} parent=1 // pred_check
      _
    $region27: #{tpu_custom_call.1} parent=1 // pred_check_branch
      %26 = sbr.rel (0) target = $region29
    $region28: #{tpu_custom_call.1} parent=1 // pred_region
      _
    $region29: #{tpu_custom_call.1} parent=1 // pred_fallthru
      _
    %v28 = vld [vmem:[%s0] sm:$0xff]
    %v29 = vld [vmem:[%s0 + $0x8] sm:$0xff]
    %v30 = vpack.c.bf16 %v28, %v28
    %v31 = vpack.c.bf16 %v29, %v29
    %v32 = vld [vmem:[%s1] sm:$0xf]
    %v33 = vld [vmem:[%s1 + $0x4] sm:$0xf]
    %v34 = vld [vmem:[%s1 + $0x8] sm:$0xf]
    %v35 = vld [vmem:[%s1 + $0xc] sm:$0xf]
    %v36 = vld [vmem:[%s1 + $0x10] sm:$0xf]
    %v37 = vld [vmem:[%s1 + $0x14] sm:$0xf]
    %v38 = vld [vmem:[%s1 + $0x18] sm:$0xf]
    %v39 = vld [vmem:[%s1 + $0x1c] sm:$0xf]
    %v40 = vld [vmem:[%s1 + $0x20] sm:$0xf]
    %v41 = vld [vmem:[%s1 + $0x24] sm:$0xf]
    %v42 = vld [vmem:[%s1 + $0x28] sm:$0xf]
    %v43 = vld [vmem:[%s1 + $0x2c] sm:$0xf]
    %v44 = vld [vmem:[%s1 + $0x30] sm:$0xf]
    %v45 = vld [vmem:[%s1 + $0x34] sm:$0xf]
    %v46 = vld [vmem:[%s1 + $0x38] sm:$0xf]
    %v47 = vld [vmem:[%s1 + $0x3c] sm:$0xf]
    %v48 = vld [vmem:[%s1 + $0x40] sm:$0xf]
    %v49 = vld [vmem:[%s1 + $0x44] sm:$0xf]
    %v50 = vld [vmem:[%s1 + $0x48] sm:$0xf]
    %v51 = vld [vmem:[%s1 + $0x4c] sm:$0xf]
    %v52 = vld [vmem:[%s1 + $0x50] sm:$0xf]
    %v53 = vld [vmem:[%s1 + $0x54] sm:$0xf]
    %v54 = vld [vmem:[%s1 + $0x58] sm:$0xf]
    %v55 = vld [vmem:[%s1 + $0x5c] sm:$0xf]
    %v56 = vld [vmem:[%s1 + $0x60] sm:$0xf]
    %v57 = vld [vmem:[%s1 + $0x64] sm:$0xf]
    %v58 = vld [vmem:[%s1 + $0x68] sm:$0xf]
    %v59 = vld [vmem:[%s1 + $0x6c] sm:$0xf]
    %v60 = vld [vmem:[%s1 + $0x70] sm:$0xf]
    %v61 = vld [vmem:[%s1 + $0x74] sm:$0xf]
    %v62 = vld [vmem:[%s1 + $0x78] sm:$0xf]
    %v63 = vld [vmem:[%s1 + $0x7c] sm:$0xf]
    %v64 = vld [vmem:[%s2] sm:$0x1]
    %v66 = vlaneseq
    %v67 = vshrl.u32 %v66, 7
    %v68 = vsub.s32 0, %v67
    %v69 = vrot.slane %v64, %v68
    %v103 = vunpack.c.l.b16 %v32
    %v104 = vunpack.c.l.b16 %v33
    %v105 = vunpack.c.l.b16 %v34
    %v106 = vunpack.c.l.b16 %v35
    %v107 = vunpack.c.l.b16 %v36
    %v108 = vunpack.c.l.b16 %v37
    %v109 = vunpack.c.l.b16 %v38
    %v110 = vunpack.c.l.b16 %v39
    %v111 = vunpack.c.l.b16 %v40
    %v112 = vunpack.c.l.b16 %v41
    %v113 = vunpack.c.l.b16 %v42
    %v114 = vunpack.c.l.b16 %v43
    %v115 = vunpack.c.l.b16 %v44
    %v116 = vunpack.c.l.b16 %v45
    %v117 = vunpack.c.l.b16 %v46
    %v118 = vunpack.c.l.b16 %v47
    %v119 = vunpack.c.l.b16 %v48
    %v120 = vunpack.c.l.b16 %v49
    %v121 = vunpack.c.l.b16 %v50
    %v122 = vunpack.c.l.b16 %v51
    %v123 = vunpack.c.l.b16 %v52
    %v124 = vunpack.c.l.b16 %v53
    %v125 = vunpack.c.l.b16 %v54
    %v126 = vunpack.c.l.b16 %v55
    %v127 = vunpack.c.l.b16 %v56
    %v128 = vunpack.c.l.b16 %v57
    %v129 = vunpack.c.l.b16 %v58
    %v130 = vunpack.c.l.b16 %v59
    %v131 = vunpack.c.l.b16 %v60
    %v132 = vunpack.c.l.b16 %v61
    %v133 = vunpack.c.l.b16 %v62
    %v134 = vunpack.c.l.b16 %v63
    %v135 = vpack.c.b16 %v104, %v103
    %v136 = vpack.c.b16 %v106, %v105
    %v137 = vpack.c.b16 %v108, %v107
    %v138 = vpack.c.b16 %v110, %v109
    %v139 = vpack.c.b16 %v112, %v111
    %v140 = vpack.c.b16 %v114, %v113
    %v141 = vpack.c.b16 %v116, %v115
    %v142 = vpack.c.b16 %v118, %v117
    %v143 = vpack.c.b16 %v120, %v119
    %v144 = vpack.c.b16 %v122, %v121
    %v145 = vpack.c.b16 %v124, %v123
    %v146 = vpack.c.b16 %v126, %v125
    %v147 = vpack.c.b16 %v128, %v127
    %v148 = vpack.c.b16 %v130, %v129
    %v149 = vpack.c.b16 %v132, %v131
    %v150 = vpack.c.b16 %v134, %v133
    %167 = vmatprep.subr.bf16.mxu0 0
    %168 = vmatpush1.bf16.msra.mxu0 %v135
    %169 = vmatprep.subr.bf16.mxu0 0
    %170 = vmatpush1.bf16.msra.mxu0 %v136
    %171 = vmatprep.subr.bf16.mxu0 0
    %172 = vmatpush1.bf16.msra.mxu0 %v137
    %173 = vmatprep.subr.bf16.mxu0 0
    %174 = vmatpush1.bf16.msra.mxu0 %v138
    %175 = vmatprep.subr.bf16.mxu0 0
    %176 = vmatpush1.bf16.msra.mxu0 %v139
    %177 = vmatprep.subr.bf16.mxu0 0
    %178 = vmatpush1.bf16.msra.mxu0 %v140
    %179 = vmatprep.subr.bf16.mxu0 0
    %180 = vmatpush1.bf16.msra.mxu0 %v141
    %181 = vmatprep.subr.bf16.mxu0 0
    %182 = vmatpush1.bf16.msra.mxu0 %v142
    %183 = vmatprep.subr.bf16.mxu0 0
    %184 = vmatpush1.bf16.msra.mxu0 %v143
    %185 = vmatprep.subr.bf16.mxu0 0
    %186 = vmatpush1.bf16.msra.mxu0 %v144
    %187 = vmatprep.subr.bf16.mxu0 0
    %188 = vmatpush1.bf16.msra.mxu0 %v145
    %189 = vmatprep.subr.bf16.mxu0 0
    %190 = vmatpush1.bf16.msra.mxu0 %v146
    %191 = vmatprep.subr.bf16.mxu0 0
    %192 = vmatpush1.bf16.msra.mxu0 %v147
    %193 = vmatprep.subr.bf16.mxu0 0
    %194 = vmatpush1.bf16.msra.mxu0 %v148
    %195 = vmatprep.subr.bf16.mxu0 0
    %196 = vmatpush1.bf16.msra.mxu0 %v149
    %197 = vmatprep.subr.bf16.mxu0 0
    %198 = vmatpush1.bf16.msra.mxu0 %v150
    %199 = vmatprep.mubr.bf16.mxu0 %v31
    %200 = vmatmul.mubr.bf16.gmra.mrb[0].mxu0 %v30
    %v201 = vpop.f32.mrb[0].mxu0
    %v202 = vadd.f32 %v69, %v201
    %v203 = vpop.f32.mrb[0].mxu0
    %v204 = vpop.f32.mrb[0].mxu0
    %v205 = vpop.f32.mrb[0].mxu0
    %206 = vdwg.mxu0
    %vm207 = vcmask 261120
    %v208 = vsel %vm207, %v202, 0.0
    %209 = vadd.xlane.f32.xlu0 %v208
    %v210 = vpop.xlane.xlu0 %209
    %v211 = vrcp.pop 32.0
    %v212 = vmul.f32 %v210, %v211
    %v213 = vsub.f32 %v202, %v212
    %v214 = vmul.f32 %v213, %v213
    %v215 = vsel %vm207, %v214, 0.0
    %216 = vadd.xlane.f32.xlu0 %v215
    %v217 = vpop.xlane.xlu0 %216
    %v218 = vmul.f32 %v217, %v211
    %v219 = vadd.f32 %v218, 1e-05
    %v220 = vrsqrt.pop %v219
    %v221 = vmul.f32 %v213, %v220
    %v222 = vld [vmem:[%s3] sm:$0x1]
    %v224 = vlaneseq
    %v225 = vshrl.u32 %v224, 7
    %v226 = vsub.s32 0, %v225
    %v227 = vrot.slane %v222, %v226
    %v229 = vmul.f32 %v221, %v227
    %v230 = vld [vmem:[%s4] sm:$0x1]
    %v232 = vlaneseq
    %v233 = vshrl.u32 %v232, 7
    %v234 = vsub.s32 0, %v233
    %v235 = vrot.slane %v230, %v234
    %v237 = vadd.f32 %v229, %v235
    %v238 = vmax.f32 %v237, 0.0
    %v239 = vpack.c.bf16 %v238, %v238
    %v240 = vld [vmem:[%s5] sm:$0xf]
    %v241 = vld [vmem:[%s5 + $0x4] sm:$0xf]
    %v242 = vld [vmem:[%s5 + $0x8] sm:$0xf]
    %v243 = vld [vmem:[%s5 + $0xc] sm:$0xf]
    %v244 = vld [vmem:[%s6] sm:$0x1]
    %v246 = vlaneseq
    %v247 = vshrl.u32 %v246, 7
    %v248 = vsub.s32 0, %v247
    %v249 = vrot.slane %v244, %v248
    %v255 = vunpack.c.l.b16 %v240
    %v256 = vunpack.c.l.b16 %v241
    %v257 = vunpack.c.l.b16 %v242
    %v258 = vunpack.c.l.b16 %v243
    %v259 = vpack.c.b16 %v256, %v255
    %v260 = vpack.c.b16 %v258, %v257
    %v264 = vsel %vm207, %v239, 0
    %266 = vmatprep.subr.bf16.mxu0 0
    %267 = vmatpush1.bf16.msra.mxu0 %v259
    %268 = vmatprep.subr.bf16.mxu0 0
    %269 = vmatpush1.bf16.msra.mxu0 %v260
    %270 = vmatprep.subr.bf16.mxu0 0
    %271 = vmatpush1.bf16.msra.mxu0 0
    %272 = vmatprep.subr.bf16.mxu0 0
    %273 = vmatpush1.bf16.msra.mxu0 0
    %274 = vmatprep.subr.bf16.mxu0 0
    %275 = vmatpush1.bf16.msra.mxu0 0
    %276 = vmatprep.subr.bf16.mxu0 0
    %277 = vmatpush1.bf16.msra.mxu0 0
    %278 = vmatprep.subr.bf16.mxu0 0
    %279 = vmatpush1.bf16.msra.mxu0 0
    %280 = vmatprep.subr.bf16.mxu0 0
    %281 = vmatpush1.bf16.msra.mxu0 0
    %282 = vmatprep.subr.bf16.mxu0 0
    %283 = vmatpush1.bf16.msra.mxu0 0
    %284 = vmatprep.subr.bf16.mxu0 0
    %285 = vmatpush1.bf16.msra.mxu0 0
    %286 = vmatprep.subr.bf16.mxu0 0
    %287 = vmatpush1.bf16.msra.mxu0 0
    %288 = vmatprep.subr.bf16.mxu0 0
    %289 = vmatpush1.bf16.msra.mxu0 0
    %290 = vmatprep.subr.bf16.mxu0 0
    %291 = vmatpush1.bf16.msra.mxu0 0
    %292 = vmatprep.subr.bf16.mxu0 0
    %293 = vmatpush1.bf16.msra.mxu0 0
    %294 = vmatprep.subr.bf16.mxu0 0
    %295 = vmatpush1.bf16.msra.mxu0 0
    %296 = vmatprep.subr.bf16.mxu0 0
    %297 = vmatpush1.bf16.msra.mxu0 0
    %298 = vmatprep.mubr.bf16.mxu0 0
    %299 = vmatmul.mubr.bf16.gmra.mrb[0].mxu0 %v264
    %v300 = vpop.f32.mrb[0].mxu0
    %v301 = vadd.f32 %v249, %v300
    %v302 = vpop.f32.mrb[0].mxu0
    %v303 = vpop.f32.mrb[0].mxu0
    %v304 = vpop.f32.mrb[0].mxu0
    %305 = vdwg.mxu0
    %vm306 = vcmp.gt.f32.partialorder %v301, 20.0
    %v307 = vmin.f32 %v301, 20.0
    %v308 = vmul.f32 %v307, 1.442695
    %v309 = vpow.pop %v308
    %v310 = vadd.f32 %v309, 1.0
    %v311 = vlog2.pop %v310
    %v312 = vmul.f32 %v311, 0.6931472
    %v313 = vmul.f32 -0.5, %v309
    %v314 = vadd.f32 %v313, 1.0
    %v315 = vmul.f32 %v314, %v309
    %v316 = vand.u32 2147483647, %v309
    %vm317 = vcmp.lt.f32.partialorder %v316, 0.0004427343
    %v318 = vsel %vm317, %v315, %v312
    %v319 = vsel %vm306, %v301, %v318
    %v320 = vlaneseq
    %v321 = vand.u32 %v320, 127
    %vm322 = vcmp.eq.s32.totalorder %v321, 0
    %v323 = vxor.u32 %v301, 2147483648
    %v324 = vmul.f32 %v323, 1.442695
    %v325 = vpow.pop %v324
    %v326 = vadd.f32 %v325, 1.0
    %v327 = vrcp.pop %v326
    %v328 = vmul.f32 1.0, %v327
    %vm329 = vcmp.eq.s32.totalorder %v321, 1
    %v330 = vadd.f32 %v319, 1.0
    %v331 = vsel %vm329, %v330, %v319
    %v332 = vsel %vm322, %v328, %v331
    %vm333 = vcmask 64512
    %334 = vst.msk [vmem:[#allocation2] sm:$0xff] %vm333, %v332
    // Predicated region
    $region30: #{tpu_custom_call.1} parent=1 // pred_check
      _
    $region31: #{tpu_custom_call.1} parent=1 // pred_check_branch
      %336 = sbr.rel (0) target = $region33
    $region32: #{tpu_custom_call.1} parent=1 // pred_region
      %s338 = ssub.s32 128, 128
      %339 = vsyncadd [#allocation3], %s338
      %s341 = sshll.u32 [#allocation2], 4
      %s342 = int_to_ptr.vmem [resolvable:$true] %s341
      %344 = dma.vmem_to_hbm [thread:$0]  %s342, 128, %s7, [#allocation3]
    $region33: #{tpu_custom_call.1} parent=1 // pred_fallthru
      _
    // Predicated region
    $region34: #{tpu_custom_call.1} parent=1 // pred_check
      _
    $region35: #{tpu_custom_call.1} parent=1 // pred_check_branch
      %346 = sbr.rel (0) target = $region37
    $region36: #{tpu_custom_call.1} parent=1 // pred_region
      %347 = dma.done [#allocation3], 128
    $region37: #{tpu_custom_call.1} parent=1 // pred_fallthru
      _
    %348 = vsyncpa [#allocation3], 1

</llo_original>
